<compile_context>
chip_gen: v5e
topology: v5e:2x2
jax: 0.10.0
libtpu: 0.0.40
codegen_flags: <defaults>
</compile_context>

<pallas_src>
import jax
import jax.numpy as jnp
from jax.experimental import pallas as pl
from jax.experimental.pallas import tpu as pltpu


def _round_up(v, m):
    return (v + m - 1) // m * m


def graphconv_kernel(cnt_ref, cols_ref, adj_ref, xk_ref, xi_ref, w_ref, b_ref,
                     o_ref, acc_ref):
    i = pl.program_id(0)
    k = pl.program_id(1)
    fc = xi_ref.shape[1]          # padded input-feature width (multiple of 128)

    @pl.when(k == 0)
    def _init():
        # Zero the aggregation half; stage the root features in the back half so
        # finalize is one fused K=2*fc matmul with no concat/copy.
        acc_ref[:, :fc] = jnp.zeros((acc_ref.shape[0], fc), jnp.float32)
        acc_ref[:, fc:] = xi_ref[...].astype(jnp.float32)

    # Accumulate A[i, cols[i,k]] @ X[cols[i,k]] only for blocks that contain edges.
    # bf16 x bf16 -> f32 accumulate: native MXU rate on v5e/v6e/v7x.
    @pl.when(k < cnt_ref[i])
    def _accumulate():
        acc_ref[:, :fc] += jnp.dot(adj_ref[...], xk_ref[...],
                                   preferred_element_type=jnp.float32)

    # Finalize exactly once per output tile: [agg | x_i] @ [W_rel ; W_root] + b, ReLU.
    @pl.when(k == pl.num_programs(1) - 1)
    def _finalize():
        out = jnp.dot(acc_ref[...].astype(jnp.bfloat16), w_ref[...],
                      preferred_element_type=jnp.float32)
        out = out + b_ref[...].astype(jnp.float32)
        o_ref[...] = jnp.maximum(out, 0.0).astype(o_ref.dtype)


def graph_conv_layer(x, edge_index, w_rel, b_rel, w_root, *, tile_n=256):
    """x: (N, Fin) f32, edge_index: (2, E) int32 (row0=src, row1=dst).

    tile_n: node-tile size for both the output-row and neighbor-K axes.  256-512
    approaches the HBM roofline (measured tile sweeps: 128 -> ~29%, 512 -> ~85% of
    roofline) and >=256 fills the 256-deep MXU on v6e/v7x, while the double-buffered
    working set stays at a few MiB (well inside v7x's 64 MiB VMEM).
    """
    n, f_in = x.shape
    f_out = w_rel.shape[1]

    # ---- tile selection ---------------------------------------------------
    tile_n = max(128, (int(tile_n) // 128) * 128)
    n_min = _round_up(n, 128)
    tile_n = min(tile_n, n_min)                 # don't over-pad tiny graphs
    # Prefer >= 2 row tiles when possible so v7x's two TensorCores both get work.
    if n_min // tile_n < 2 and tile_n > 128:
        tile_n = max(128, _round_up(n_min // 2, 128))
    tm = tk = tile_n
    n_pad = _round_up(n_min, tile_n)
    fc = _round_up(f_in, 128)                   # lane-dense contraction depth
    fo = _round_up(f_out, 128)                  # lane-dense output (unmasked vst)
    rt, kt = n_pad // tm, n_pad // tk

    # ---- padded operands: bf16 HBM streams, f32 accumulate in-kernel -------
    x_p = jnp.zeros((n_pad, fc), jnp.bfloat16).at[:n, :f_in].set(
        x.astype(jnp.bfloat16))

    # Fused projection weight, applied to [agg | x_i] (padding rows/cols are zero,
    # so padded output columns are exactly 0 and get sliced off).
    w_p = jnp.zeros((2 * fc, fo), jnp.bfloat16)
    w_p = w_p.at[:f_in, :f_out].set(w_rel.astype(jnp.bfloat16))
    w_p = w_p.at[fc:fc + f_in, :f_out].set(w_root.astype(jnp.bfloat16))
    b_p = jnp.zeros((1, fo), jnp.bfloat16).at[:, :f_out].set(
        b_rel.astype(jnp.bfloat16))

    src = edge_index[0].astype(jnp.int32)
    dst = edge_index[1].astype(jnp.int32)

    # Dense padded adjacency, built directly in bf16 (single O(N^2) allocation).
    # Exact while per-edge multiplicity < 256.
    adj = jnp.zeros((n_pad, n_pad), jnp.bfloat16).at[dst, src].add(1.0)

    # ---- block-sparsity metadata from the edge list (O(E)), scalar prefetch ----
    blk_flat = (dst // tm) * kt + (src // tk)
    blk_cnt = jnp.zeros((rt * kt,), jnp.int32).at[blk_flat].add(1)
    blk_nz = blk_cnt.reshape(rt, kt) > 0                        # (rt, kt)
    counts = blk_nz.sum(axis=1).astype(jnp.int32)               # (rt,)
    order = jnp.argsort(~blk_nz, axis=1, stable=True).astype(jnp.int32)
    # Padded K steps repeat the last nonzero block index so their DMA is skipped
    # (runtime block-index revisit check) and pl.when skips their compute.
    last = jnp.take_along_axis(order, jnp.maximum(counts - 1, 0)[:, None], axis=1)
    k_idx = jnp.arange(kt, dtype=jnp.int32)[None, :]
    cols = jnp.where(k_idx < jnp.maximum(counts, 1)[:, None], order, last)
    k_eff = kt   # static grid extent: no host sync, no per-graph recompile

    cost = pl.CostEstimate(
        flops=2 * n_pad * n_pad * fc + 2 * n_pad * (2 * fc) * fo,
        transcendentals=0,
        bytes_accessed=(2 * n_pad * n_pad            # bf16 adjacency
                        + 2 * n_pad * fc * 2         # bf16 X (agg + root streams)
                        + 2 * 2 * fc * fo + 2 * fo   # bf16 weights + bias
                        + 4 * n_pad * fo),           # f32 output
    )

    out_p = pl.pallas_call(
        graphconv_kernel,
        out_shape=jax.ShapeDtypeStruct((n_pad, fo), jnp.float32),
        grid_spec=pltpu.PrefetchScalarGridSpec(
            num_scalar_prefetch=2,                   # counts, cols -> SMEM
            grid=(rt, k_eff),
            in_specs=[
                # adjacency block (i, cols[i,k]) -- clamped cols skip padded fetches
                pl.BlockSpec((tm, tk), lambda i, k, cnt, cols: (i, cols[i, k])),
                # X rows for aggregation: block cols[i,k]
                pl.BlockSpec((tk, fc), lambda i, k, cnt, cols: (cols[i, k], 0)),
                # X rows for the root term: block i (constant across k)
                pl.BlockSpec((tm, fc), lambda i, k, cnt, cols: (i, 0)),
                # fused weights and bias: whole arrays, resident
                pl.BlockSpec((2 * fc, fo), lambda i, k, cnt, cols: (0, 0)),
                pl.BlockSpec((1, fo), lambda i, k, cnt, cols: (0, 0)),
            ],
            out_specs=pl.BlockSpec((tm, fo), lambda i, k, cnt, cols: (i, 0)),
            # f32 accumulator holds [agg | x_root] so finalize needs no concat.
            scratch_shapes=[pltpu.VMEM((tm, 2 * fc), jnp.float32)],
        ),
        compiler_params=pltpu.CompilerParams(
            dimension_semantics=("parallel", "arbitrary"),
            vmem_limit_bytes=32 * 1024 * 1024,       # above v5e's 16 MiB default,
        ),                                           # well under v7x's 64 MiB phys
        cost_estimate=cost,
    )(counts, cols, adj, x_p, x_p, w_p, b_p)

    return out_p[:n, :f_out]


def reference(x, edge_index, w_rel, b_rel, w_root):
    n = x.shape[0]
    src, dst = edge_index[0], edge_index[1]
    adj = jnp.zeros((n, n), dtype=jnp.float32).at[dst, src].add(1.0)
    agg = adj @ x
    out = agg @ w_rel + b_rel + x @ w_root
    return jnp.maximum(out, 0.0)


if __name__ == "__main__":
    key = jax.random.PRNGKey(0)
    k_x, k_e, k_wr, k_br, k_wo = jax.random.split(key, 5)

    # Small shapes: N=8 nodes, in_feat=16, out_feat=32, E=24 edges.
    N, F_IN, F_OUT, E = 8, 16, 32, 24

    x = jax.random.normal(k_x, (N, F_IN), dtype=jnp.float32)
    edge_index = jax.random.randint(k_e, (2, E), 0, N, dtype=jnp.int32)

    # Weights stored as (Fin, Fout), i.e. transposed vs torch's (Fout, Fin).
    scale_rel = (2.0 / (F_IN + F_OUT)) ** 0.5
    w_rel = scale_rel * jax.random.normal(k_wr, (F_IN, F_OUT), dtype=jnp.float32)
    b_rel = 0.01 * jax.random.normal(k_br, (1, F_OUT), dtype=jnp.float32)
    w_root = scale_rel * jax.random.normal(k_wo, (F_IN, F_OUT), dtype=jnp.float32)

    out = graph_conv_layer(x, edge_index, w_rel, b_rel, w_root)
    out = jax.block_until_ready(out)

    ref = reference(x, edge_index, w_rel, b_rel, w_root)
    assert out.shape == (N, F_OUT)
    # bf16 operand streams (f32 accumulation) -> tolerance loosened vs pure-f32.
    assert jnp.allclose(out, ref, atol=1e-1, rtol=1e-2), "mismatch vs reference"

    print("KERNEL_OK")
</pallas_src>

<mosaic_0001>
module attributes {stable_mosaic.version = 11 : i64} {
  func.func @graphconv_kernel(%arg0: i32, %arg1: i32, %arg2: memref<1xi32, #tpu.memory_space<smem>>, %arg3: memref<1x1xi32, #tpu.memory_space<smem>>, %arg4: memref<128x128xbf16, #tpu.memory_space<vmem>>, %arg5: memref<128x128xbf16, #tpu.memory_space<vmem>>, %arg6: memref<128x128xbf16, #tpu.memory_space<vmem>>, %arg7: memref<256x128xbf16, #tpu.memory_space<vmem>>, %arg8: memref<1x128xbf16, #tpu.memory_space<vmem>>, %arg9: memref<128x128xf32, #tpu.memory_space<vmem>>, %arg10: memref<128x256xf32, #tpu.memory_space<vmem>>) attributes {dimension_semantics = [#tpu.dimension_semantics<parallel>, #tpu.dimension_semantics<arbitrary>], iteration_bounds = array<i64: 1, 1>, scalar_prefetch = 2 : i64, scratch_operands = 1 : i64, tpu.core_type = #tpu.core_type<tc>, window_params = [{transform_indices = @transform_0, window_bounds = array<i64: 128, 128>}, {transform_indices = @transform_1, window_bounds = array<i64: 128, 128>}, {transform_indices = @transform_2, window_bounds = array<i64: 128, 128>}, {pipeline_mode = #tpu.pipeline_mode<synchronous>, transform_indices = @transform_3, window_bounds = array<i64: 256, 128>}, {pipeline_mode = #tpu.pipeline_mode<synchronous>, transform_indices = @transform_4, window_bounds = array<i64: 1, 128>}, {transform_indices = @transform_5, window_bounds = array<i64: 128, 128>}]} {
    %c0_i32 = arith.constant 0 : i32
    %0 = arith.cmpi eq, %arg1, %c0_i32 : i32
    %1 = arith.extui %0 : i1 to i32
    %c0_i32_0 = arith.constant 0 : i32
    %2 = arith.cmpi ne, %1, %c0_i32_0 : i32
    scf.if %2 {
      %cst = arith.constant 0.000000e+00 : f32
      %11 = vector.broadcast %cst : f32 to vector<128x128xf32>
      %c0 = arith.constant 0 : index
      %c0_4 = arith.constant 0 : index
      %12 = vector.load %arg10[%c0, %c0_4] : memref<128x256xf32, #tpu.memory_space<vmem>>, vector<128x128xf32>
      tpu.vector_store %arg10[%c0, %c0_4], %11 {strides = array<i32>} : memref<128x256xf32, #tpu.memory_space<vmem>>, vector<128x128xf32>,
      %c0_5 = arith.constant 0 : index
      %c0_6 = arith.constant 0 : index
      %13 = vector.load %arg6[%c0_5, %c0_6] : memref<128x128xbf16, #tpu.memory_space<vmem>>, vector<128x128xbf16>
      %14 = arith.extf %13 : vector<128x128xbf16> to vector<128x128xf32>
      %c0_7 = arith.constant 0 : index
      %c128 = arith.constant 128 : index
      %15 = vector.load %arg10[%c0_7, %c128] : memref<128x256xf32, #tpu.memory_space<vmem>>, vector<128x128xf32>
      tpu.vector_store %arg10[%c0_7, %c128], %14 {strides = array<i32>} : memref<128x256xf32, #tpu.memory_space<vmem>>, vector<128x128xf32>,
    } else {
    }
    %3 = arith.index_cast %arg0 : i32 to index
    %4 = memref.load %arg2[%3] : memref<1xi32, #tpu.memory_space<smem>>
    %5 = arith.cmpi slt, %arg1, %4 : i32
    %6 = arith.extui %5 : i1 to i32
    %c0_i32_1 = arith.constant 0 : i32
    %7 = arith.cmpi ne, %6, %c0_i32_1 : i32
    scf.if %7 {
      %c0 = arith.constant 0 : index
      %c0_4 = arith.constant 0 : index
      %11 = vector.load %arg10[%c0, %c0_4] : memref<128x256xf32, #tpu.memory_space<vmem>>, vector<128x128xf32>
      %c0_5 = arith.constant 0 : index
      %c0_6 = arith.constant 0 : index
      %12 = vector.load %arg4[%c0_5, %c0_6] : memref<128x128xbf16, #tpu.memory_space<vmem>>, vector<128x128xbf16>
      %c0_7 = arith.constant 0 : index
      %c0_8 = arith.constant 0 : index
      %13 = vector.load %arg5[%c0_7, %c0_8] : memref<128x128xbf16, #tpu.memory_space<vmem>>, vector<128x128xbf16>
      %cst = arith.constant dense<0.000000e+00> : vector<128x128xf32>
      %14 = tpu.matmul %12, %13, %cst {dimension_numbers = #tpu.dot_dimension_numbers<[1], [0], [0], [1], [0, 0, 1, 1], [], []>} : vector<128x128xbf16>, vector<128x128xbf16>, vector<128x128xf32> -> vector<128x128xf32>
      %15 = arith.addf %11, %14 : vector<128x128xf32>
      %c0_9 = arith.constant 0 : index
      %c0_10 = arith.constant 0 : index
      %16 = vector.load %arg10[%c0_9, %c0_10] : memref<128x256xf32, #tpu.memory_space<vmem>>, vector<128x128xf32>
      tpu.vector_store %arg10[%c0_9, %c0_10], %15 {strides = array<i32>} : memref<128x256xf32, #tpu.memory_space<vmem>>, vector<128x128xf32>,
    } else {
    }
    %c0_i32_2 = arith.constant 0 : i32
    %8 = arith.cmpi eq, %arg1, %c0_i32_2 : i32
    %9 = arith.extui %8 : i1 to i32
    %c0_i32_3 = arith.constant 0 : i32
    %10 = arith.cmpi ne, %9, %c0_i32_3 : i32
    scf.if %10 {
      %c0 = arith.constant 0 : index
      %c0_4 = arith.constant 0 : index
      %11 = vector.load %arg10[%c0, %c0_4] : memref<128x256xf32, #tpu.memory_space<vmem>>, vector<128x256xf32>
      %12 = arith.truncf %11 : vector<128x256xf32> to vector<128x256xbf16>
      %c0_5 = arith.constant 0 : index
      %c0_6 = arith.constant 0 : index
      %13 = vector.load %arg7[%c0_5, %c0_6] : memref<256x128xbf16, #tpu.memory_space<vmem>>, vector<256x128xbf16>
      %cst = arith.constant dense<0.000000e+00> : vector<128x128xf32>
      %14 = tpu.matmul %12, %13, %cst {dimension_numbers = #tpu.dot_dimension_numbers<[1], [0], [0], [1], [0, 0, 1, 1], [], []>} : vector<128x256xbf16>, vector<256x128xbf16>, vector<128x128xf32> -> vector<128x128xf32>
      %c0_7 = arith.constant 0 : index
      %c0_8 = arith.constant 0 : index
      %15 = vector.load %arg8[%c0_7, %c0_8] : memref<1x128xbf16, #tpu.memory_space<vmem>>, vector<1x128xbf16>
      %16 = arith.extf %15 : vector<1x128xbf16> to vector<1x128xf32>
      %17 = vector.broadcast %16 : vector<1x128xf32> to vector<128x128xf32>
      %18 = arith.addf %14, %17 : vector<128x128xf32>
      %cst_9 = arith.constant 0.000000e+00 : f32
      %19 = vector.broadcast %cst_9 : f32 to vector<128x128xf32>
      %20 = arith.maximumf %18, %19 : vector<128x128xf32>
      %c0_10 = arith.constant 0 : index
      %c0_11 = arith.constant 0 : index
      %21 = vector.load %arg9[%c0_10, %c0_11] : memref<128x128xf32, #tpu.memory_space<vmem>>, vector<128x128xf32>
      tpu.vector_store %arg9[%c0_10, %c0_11], %20 {strides = array<i32>} : memref<128x128xf32, #tpu.memory_space<vmem>>, vector<128x128xf32>,
    } else {
    }
    return
  }
  func.func @transform_0(%arg0: i32, %arg1: i32, %arg2: memref<1xi32, #tpu.memory_space<smem>>, %arg3: memref<1x1xi32, #tpu.memory_space<smem>>) -> (i32, i32) {
    %0 = arith.index_cast %arg0 : i32 to index
    %1 = arith.index_cast %arg1 : i32 to index
    %2 = memref.load %arg3[%0, %1] : memref<1x1xi32, #tpu.memory_space<smem>>
    %c0_i32 = arith.constant 0 : i32
    return %arg0, %2 : i32, i32
  }
  func.func @transform_1(%arg0: i32, %arg1: i32, %arg2: memref<1xi32, #tpu.memory_space<smem>>, %arg3: memref<1x1xi32, #tpu.memory_space<smem>>) -> (i32, i32) {
    %0 = arith.index_cast %arg0 : i32 to index
    %1 = arith.index_cast %arg1 : i32 to index
    %2 = memref.load %arg3[%0, %1] : memref<1x1xi32, #tpu.memory_space<smem>>
    %c0_i32 = arith.constant 0 : i32
    %c0_i32_0 = arith.constant 0 : i32
    return %2, %c0_i32 : i32, i32
  }
  func.func @transform_2(%arg0: i32, %arg1: i32, %arg2: memref<1xi32, #tpu.memory_space<smem>>, %arg3: memref<1x1xi32, #tpu.memory_space<smem>>) -> (i32, i32) {
    %c0_i32 = arith.constant 0 : i32
    %c0_i32_0 = arith.constant 0 : i32
    return %arg0, %c0_i32 : i32, i32
  }
  func.func @transform_3(%arg0: i32, %arg1: i32, %arg2: memref<1xi32, #tpu.memory_space<smem>>, %arg3: memref<1x1xi32, #tpu.memory_space<smem>>) -> (i32, i32) {
    %c0_i32 = arith.constant 0 : i32
    %c0_i32_0 = arith.constant 0 : i32
    %c0_i32_1 = arith.constant 0 : i32
    return %c0_i32, %c0_i32_0 : i32, i32
  }
  func.func @transform_4(%arg0: i32, %arg1: i32, %arg2: memref<1xi32, #tpu.memory_space<smem>>, %arg3: memref<1x1xi32, #tpu.memory_space<smem>>) -> (i32, i32) {
    %c0_i32 = arith.constant 0 : i32
    %c0_i32_0 = arith.constant 0 : i32
    %c0_i32_1 = arith.constant 0 : i32
    return %c0_i32, %c0_i32_0 : i32, i32
  }
  func.func @transform_5(%arg0: i32, %arg1: i32, %arg2: memref<1xi32, #tpu.memory_space<smem>>, %arg3: memref<1x1xi32, #tpu.memory_space<smem>>) -> (i32, i32) {
    %c0_i32 = arith.constant 0 : i32
    %c0_i32_0 = arith.constant 0 : i32
    return %arg0, %c0_i32 : i32, i32
  }
}

</mosaic_0001>

<llo_original>
// kernel: tpu_custom_call.1
$region0: #{tpu_custom_call.1}
  #allocation0 [shape = 'u32[]', space=smem, size = 0x4, offset = 0x4, fixed_abs, tag = 'smem constant byte address 0x4 - core index']
  #allocation1 [shape = 'u32[72,128]{1,0:T(1,128)}', space=vmem, size = 0x9000, scoped, tag = 'internal scratch']
  #allocation2 [shape = 'f32[128,256]{1,0:T(8,128)}', space=vmem, size = 0x20000, scoped, tag = 'scratch operand']
  #allocation3 [shape = 's32[1]{0}', space=sflag, size = 0x4, scoped, tag = 'scoped memory for tpu_custom_call.1']
  #allocation4 [shape = 's32[1]{0:T(128)S(6)}', space=smem, size = 0x200, scoped, tag = 'prefetched SMEM operand 0']
  #allocation5 [shape = 's32[1,1]{1,0:T(1,128)S(6)}', space=smem, size = 0x200, scoped, tag = 'prefetched SMEM operand 1']
  %s0 = inlined_call_operand.<no memory space> [shape: s32[1], index: 0, kind: input, shape index: {}]
  %s1 = inlined_call_operand.<no memory space> [shape: s32[1,1], index: 1, kind: input, shape index: {}]
  %s2 = inlined_call_operand.hbm [shape: bf16[128,128], index: 2, kind: input, shape index: {}]
  %s3 = inlined_call_operand.hbm [shape: bf16[128,128], index: 3, kind: input, shape index: {}]
  %s4 = inlined_call_operand.hbm [shape: bf16[128,128], index: 4, kind: input, shape index: {}]
  %s5 = inlined_call_operand.hbm [shape: bf16[256,128], index: 5, kind: input, shape index: {}]
  %s6 = inlined_call_operand.vmem [shape: bf16[1,128], index: 6, kind: input, shape index: {}]
  %s7 = inlined_call_operand.hbm [shape: f32[128,128], index: 7, kind: output, shape index: {}]
  %s8 = sld [smem:[#allocation0]]
  $region58: #{tpu_custom_call.1} parent=0
    _
  %s10 = ssub.s32 1, %s8
  %s11 = scalar_select 0, %s10, %s8
  %12 = sst [smem:[#allocation4]] %s0
  %13 = sst [smem:[#allocation5]] %s1
  $region1: #{tpu_custom_call.1} parent=0
    #allocation6 [shape = 'u8[32768]{0}', space=vmem, size = 0x8000, scoped, tag = 'input window, operand 2, single buffered']
    #allocation7 [shape = 's32[1]{0}', space=sflag, size = 0x4, scoped, tag = 'scoped memory for tpu_custom_call.1']
    #allocation8 [shape = 's32[1]{0}', space=sflag, size = 0x4, scoped, tag = 'scoped memory for tpu_custom_call.1']
    #allocation9 [shape = 'u8[32768]{0}', space=vmem, size = 0x8000, scoped, tag = 'input window, operand 3, single buffered']
    #allocation10 [shape = 's32[1]{0}', space=sflag, size = 0x4, scoped, tag = 'scoped memory for tpu_custom_call.1']
    #allocation11 [shape = 'u8[32768]{0}', space=vmem, size = 0x8000, scoped, tag = 'input window, operand 4, single buffered']
    #allocation12 [shape = 'u8[65536]{0}', space=vmem, size = 0x10000, scoped, tag = 'input window, operand 5, single buffered']
    #allocation13 [shape = 's32[1]{0}', space=sflag, size = 0x4, scoped, tag = 'scoped memory for tpu_custom_call.1']
    #allocation14 [shape = 'u8[65536]{0}', space=vmem, size = 0x10000, scoped, tag = 'output window, operand 0, single buffered']
    %14 = vsyncpa [#allocation7], 0
    %15 = vsyncpa [#allocation10], 0
    %16 = vsyncpa [#allocation13], 0
    %17 = vsyncpa [#allocation8], 0
    // Predicated region
    $region2: #{tpu_custom_call.1} parent=1 // pred_check
      _
    $region3: #{tpu_custom_call.1} parent=1 // pred_check_branch
      %19 = sbr.rel (0) target = $region5
    $region4: #{tpu_custom_call.1} parent=1 // pred_region
      %s20 = sadd.s32 0, 0
      %s21 = smul.u32 %s20, 128
      %s22 = sadd.s32 %s21, 0
      %s23 = sld [smem:[#allocation5 + %s22]]
      %25 = vsyncadd [#allocation7], 0
      %s26 = smul.addr %s23, 4
      %s27 = scalar_lea.hbm %s2, %s26
      %s28 = sshll.u32 %s27, 4
      %s29 = int_to_ptr.hbm [resolvable:$true] %s28
      %s30 = sshll.u32 [#allocation6], 4
      %s31 = int_to_ptr.vmem [resolvable:$true] %s30
      %36 = dma.hbm_to_vmem [thread:$0]  %s29, 1024, %s31, [#allocation7], 64, 64, 4
    $region5: #{tpu_custom_call.1} parent=1 // pred_fallthru
      _
    // Predicated region
    $region6: #{tpu_custom_call.1} parent=1 // pred_check
      _
    $region7: #{tpu_custom_call.1} parent=1 // pred_check_branch
      %38 = sbr.rel (0) target = $region9
    $region8: #{tpu_custom_call.1} parent=1 // pred_region
      %s39 = sadd.s32 0, 0
      %s40 = smul.u32 %s39, 128
      %s41 = sadd.s32 %s40, 0
      %s42 = sld [smem:[#allocation5 + %s41]]
      %s43 = smul.u32 16, %s42
      %45 = vsyncadd [#allocation10], 0
      %s46 = smul.addr %s43, 4
      %s47 = scalar_lea.hbm %s3, %s46
      %s48 = sshll.u32 %s47, 4
      %s49 = int_to_ptr.hbm [resolvable:$true] %s48
      %s50 = sshll.u32 [#allocation9], 4
      %s51 = int_to_ptr.vmem [resolvable:$true] %s50
      %56 = dma.hbm_to_vmem [thread:$0]  %s49, 1024, %s51, [#allocation10], 64, 64, 4
    $region9: #{tpu_custom_call.1} parent=1 // pred_fallthru
      _
    // Predicated region
    $region10: #{tpu_custom_call.1} parent=1 // pred_check
      _
    $region11: #{tpu_custom_call.1} parent=1 // pred_check_branch
      %58 = sbr.rel (0) target = $region13
    $region12: #{tpu_custom_call.1} parent=1 // pred_region
      %60 = vsyncadd [#allocation10], 0
      %s61 = sshll.u32 %s4, 4
      %s62 = int_to_ptr.hbm [resolvable:$true] %s61
      %s63 = sshll.u32 [#allocation11], 4
      %s64 = int_to_ptr.vmem [resolvable:$true] %s63
      %69 = dma.hbm_to_vmem [thread:$0]  %s62, 1024, %s64, [#allocation10], 64, 64, 4
    $region13: #{tpu_custom_call.1} parent=1 // pred_fallthru
      _
    // Predicated region
    $region14: #{tpu_custom_call.1} parent=1 // pred_check
      _
    $region15: #{tpu_custom_call.1} parent=1 // pred_check_branch
      %71 = sbr.rel (0) target = $region17
    $region16: #{tpu_custom_call.1} parent=1 // pred_region
      %73 = vsyncadd [#allocation13], 0
      %s74 = sshll.u32 %s5, 4
      %s75 = int_to_ptr.hbm [resolvable:$true] %s74
      %s76 = sshll.u32 [#allocation12], 4
      %s77 = int_to_ptr.vmem [resolvable:$true] %s76
      %82 = dma.hbm_to_vmem [thread:$0]  %s75, 2048, %s77, [#allocation13], 64, 64, 4
    $region17: #{tpu_custom_call.1} parent=1 // pred_fallthru
      _
    // Predicated region
    $region18: #{tpu_custom_call.1} parent=1 // pred_check
      _
    $region19: #{tpu_custom_call.1} parent=1 // pred_check_branch
      %84 = sbr.rel (0) target = $region21
    $region20: #{tpu_custom_call.1} parent=1 // pred_region
      _
    $region21: #{tpu_custom_call.1} parent=1 // pred_fallthru
      _
    // Predicated region
    $region22: #{tpu_custom_call.1} parent=1 // pred_check
      _
    $region23: #{tpu_custom_call.1} parent=1 // pred_check_branch
      %86 = sbr.rel (0) target = $region25
    $region24: #{tpu_custom_call.1} parent=1 // pred_region
      %88 = dma.done [#allocation7], 1024
    $region25: #{tpu_custom_call.1} parent=1 // pred_fallthru
      _
    // Predicated region
    $region26: #{tpu_custom_call.1} parent=1 // pred_check
      _
    $region27: #{tpu_custom_call.1} parent=1 // pred_check_branch
      %90 = sbr.rel (0) target = $region29
    $region28: #{tpu_custom_call.1} parent=1 // pred_region
      %92 = dma.done [#allocation10], 1024
    $region29: #{tpu_custom_call.1} parent=1 // pred_fallthru
      _
    // Predicated region
    $region30: #{tpu_custom_call.1} parent=1 // pred_check
      _
    $region31: #{tpu_custom_call.1} parent=1 // pred_check_branch
      %94 = sbr.rel (0) target = $region33
    $region32: #{tpu_custom_call.1} parent=1 // pred_region
      %96 = dma.done [#allocation10], 1024
    $region33: #{tpu_custom_call.1} parent=1 // pred_fallthru
      _
    // Predicated region
    $region34: #{tpu_custom_call.1} parent=1 // pred_check
      _
    $region35: #{tpu_custom_call.1} parent=1 // pred_check_branch
      %98 = sbr.rel (0) target = $region37
    $region36: #{tpu_custom_call.1} parent=1 // pred_region
      %100 = dma.done [#allocation13], 2048
    $region37: #{tpu_custom_call.1} parent=1 // pred_fallthru
      _
    %s101 = sadd.s32 0, 0
    %s102 = smul.u32 %s101, 128
    %s103 = sadd.s32 %s102, 0
    %s104 = sld [smem:[#allocation5 + %s103]]
    %s105 = sadd.s32 0, 0
    %s106 = smul.u32 %s105, 128
    %s107 = sadd.s32 %s106, 0
    %s108 = sld [smem:[#allocation5 + %s107]]
    %s109 = smul.u32 16, %s108
    %p110 = scmp.eq.s32.totalorder 0, 0
    // Predicated region
    $region38: #{tpu_custom_call.1} parent=1 // pred_check
      %p111 = pneg %p110
    $region39: #{tpu_custom_call.1} parent=1 // pred_check_branch
      %113 = sbr.rel (%p111) target = $region41
    $region40: #{tpu_custom_call.1} parent=1 // pred_region
      %114 = vst [vmem:[#allocation2] sm:$0xff] 0.0
      %115 = vst [vmem:[#allocation2 + $0x10] sm:$0xff] 0.0
      %116 = vst [vmem:[#allocation2 + $0x20] sm:$0xff] 0.0
      %117 = vst [vmem:[#allocation2 + $0x30] sm:$0xff] 0.0
      %118 = vst [vmem:[#allocation2 + $0x40] sm:$0xff] 0.0
      %119 = vst [vmem:[#allocation2 + $0x50] sm:$0xff] 0.0
      %120 = vst [vmem:[#allocation2 + $0x60] sm:$0xff] 0.0
      %121 = vst [vmem:[#allocation2 + $0x70] sm:$0xff] 0.0
      %122 = vst [vmem:[#allocation2 + $0x80] sm:$0xff] 0.0
      %123 = vst [vmem:[#allocation2 + $0x90] sm:$0xff] 0.0
      %124 = vst [vmem:[#allocation2 + $0xa0] sm:$0xff] 0.0
      %125 = vst [vmem:[#allocation2 + $0xb0] sm:$0xff] 0.0
      %126 = vst [vmem:[#allocation2 + $0xc0] sm:$0xff] 0.0
      %127 = vst [vmem:[#allocation2 + $0xd0] sm:$0xff] 0.0
      %128 = vst [vmem:[#allocation2 + $0xe0] sm:$0xff] 0.0
      %129 = vst [vmem:[#allocation2 + $0xf0] sm:$0xff] 0.0
      %v130 = vld [vmem:[#allocation11] sm:$0xf]
      %v131 = vld [vmem:[#allocation11 + $0x4] sm:$0xf]
      %v132 = vld [vmem:[#allocation11 + $0x8] sm:$0xf]
      %v133 = vld [vmem:[#allocation11 + $0xc] sm:$0xf]
      %v134 = vld [vmem:[#allocation11 + $0x10] sm:$0xf]
      %v135 = vld [vmem:[#allocation11 + $0x14] sm:$0xf]
      %v136 = vld [vmem:[#allocation11 + $0x18] sm:$0xf]
      %v137 = vld [vmem:[#allocation11 + $0x1c] sm:$0xf]
      %v138 = vld [vmem:[#allocation11 + $0x20] sm:$0xf]
      %v139 = vld [vmem:[#allocation11 + $0x24] sm:$0xf]
      %v140 = vld [vmem:[#allocation11 + $0x28] sm:$0xf]
      %v141 = vld [vmem:[#allocation11 + $0x2c] sm:$0xf]
      %v142 = vld [vmem:[#allocation11 + $0x30] sm:$0xf]
      %v143 = vld [vmem:[#allocation11 + $0x34] sm:$0xf]
      %v144 = vld [vmem:[#allocation11 + $0x38] sm:$0xf]
      %v145 = vld [vmem:[#allocation11 + $0x3c] sm:$0xf]
      %v146 = vunpack.c.l.bf16 %v130
      %v147 = vunpack.c.l.bf16 %v131
      %v148 = vunpack.c.l.bf16 %v132
      %v149 = vunpack.c.l.bf16 %v133
      %v150 = vunpack.c.l.bf16 %v134
      %v151 = vunpack.c.l.bf16 %v135
      %v152 = vunpack.c.l.bf16 %v136
      %v153 = vunpack.c.l.bf16 %v137
      %v154 = vunpack.c.l.bf16 %v138
      %v155 = vunpack.c.l.bf16 %v139
      %v156 = vunpack.c.l.bf16 %v140
      %v157 = vunpack.c.l.bf16 %v141
      %v158 = vunpack.c.l.bf16 %v142
      %v159 = vunpack.c.l.bf16 %v143
      %v160 = vunpack.c.l.bf16 %v144
      %v161 = vunpack.c.l.bf16 %v145
      %162 = vst [vmem:[#allocation2 + $0x8] sm:$0xff] %v146
      %163 = vst [vmem:[#allocation2 + $0x18] sm:$0xff] %v147
      %164 = vst [vmem:[#allocation2 + $0x28] sm:$0xff] %v148
      %165 = vst [vmem:[#allocation2 + $0x38] sm:$0xff] %v149
      %166 = vst [vmem:[#allocation2 + $0x48] sm:$0xff] %v150
      %167 = vst [vmem:[#allocation2 + $0x58] sm:$0xff] %v151
      %168 = vst [vmem:[#allocation2 + $0x68] sm:$0xff] %v152
      %169 = vst [vmem:[#allocation2 + $0x78] sm:$0xff] %v153
      %170 = vst [vmem:[#allocation2 + $0x88] sm:$0xff] %v154
      %171 = vst [vmem:[#allocation2 + $0x98] sm:$0xff] %v155
      %172 = vst [vmem:[#allocation2 + $0xa8] sm:$0xff] %v156
      %173 = vst [vmem:[#allocation2 + $0xb8] sm:$0xff] %v157
      %174 = vst [vmem:[#allocation2 + $0xc8] sm:$0xff] %v158
      %175 = vst [vmem:[#allocation2 + $0xd8] sm:$0xff] %v159
      %176 = vst [vmem:[#allocation2 + $0xe8] sm:$0xff] %v160
      %177 = vst [vmem:[#allocation2 + $0xf8] sm:$0xff] %v161
    $region41: #{tpu_custom_call.1} parent=1 // pred_fallthru
      _
    %s178 = sld [smem:[#allocation4]]
    %p179 = scmp.lt.s32.totalorder 0, %s178
    // Predicated region
    $region42: #{tpu_custom_call.1} parent=1 // pred_check
      %p180 = pneg %p179
    $region43: #{tpu_custom_call.1} parent=1 // pred_check_branch
      %182 = sbr.rel (%p180) target = $region45
    $region44: #{tpu_custom_call.1} parent=1 // pred_region
      %v183 = vld [vmem:[#allocation2] sm:$0xff]
      %v184 = vld [vmem:[#allocation2 + $0x10] sm:$0xff]
      %v185 = vld [vmem:[#allocation2 + $0x20] sm:$0xff]
      %v186 = vld [vmem:[#allocation2 + $0x30] sm:$0xff]
      %v187 = vld [vmem:[#allocation2 + $0x40] sm:$0xff]
      %v188 = vld [vmem:[#allocation2 + $0x50] sm:$0xff]
      %v189 = vld [vmem:[#allocation2 + $0x60] sm:$0xff]
      %v190 = vld [vmem:[#allocation2 + $0x70] sm:$0xff]
      %v191 = vld [vmem:[#allocation2 + $0x80] sm:$0xff]
      %v192 = vld [vmem:[#allocation2 + $0x90] sm:$0xff]
      %v193 = vld [vmem:[#allocation2 + $0xa0] sm:$0xff]
      %v194 = vld [vmem:[#allocation2 + $0xb0] sm:$0xff]
      %v195 = vld [vmem:[#allocation2 + $0xc0] sm:$0xff]
      %v196 = vld [vmem:[#allocation2 + $0xd0] sm:$0xff]
      %v197 = vld [vmem:[#allocation2 + $0xe0] sm:$0xff]
      %v198 = vld [vmem:[#allocation2 + $0xf0] sm:$0xff]
      %v199 = vld [vmem:[#allocation6] sm:$0xf]
      %v200 = vld [vmem:[#allocation6 + $0x4] sm:$0xf]
      %v201 = vld [vmem:[#allocation6 + $0x8] sm:$0xf]
      %v202 = vld [vmem:[#allocation6 + $0xc] sm:$0xf]
      %v203 = vld [vmem:[#allocation6 + $0x10] sm:$0xf]
      %v204 = vld [vmem:[#allocation6 + $0x14] sm:$0xf]
      %v205 = vld [vmem:[#allocation6 + $0x18] sm:$0xf]
      %v206 = vld [vmem:[#allocation6 + $0x1c] sm:$0xf]
      %v207 = vld [vmem:[#allocation6 + $0x20] sm:$0xf]
      %v208 = vld [vmem:[#allocation6 + $0x24] sm:$0xf]
      %v209 = vld [vmem:[#allocation6 + $0x28] sm:$0xf]
      %v210 = vld [vmem:[#allocation6 + $0x2c] sm:$0xf]
      %v211 = vld [vmem:[#allocation6 + $0x30] sm:$0xf]
      %v212 = vld [vmem:[#allocation6 + $0x34] sm:$0xf]
      %v213 = vld [vmem:[#allocation6 + $0x38] sm:$0xf]
      %v214 = vld [vmem:[#allocation6 + $0x3c] sm:$0xf]
      %v215 = vld [vmem:[#allocation9] sm:$0xf]
      %v216 = vld [vmem:[#allocation9 + $0x4] sm:$0xf]
      %v217 = vld [vmem:[#allocation9 + $0x8] sm:$0xf]
      %v218 = vld [vmem:[#allocation9 + $0xc] sm:$0xf]
      %v219 = vld [vmem:[#allocation9 + $0x10] sm:$0xf]
      %v220 = vld [vmem:[#allocation9 + $0x14] sm:$0xf]
      %v221 = vld [vmem:[#allocation9 + $0x18] sm:$0xf]
      %v222 = vld [vmem:[#allocation9 + $0x1c] sm:$0xf]
      %v223 = vld [vmem:[#allocation9 + $0x20] sm:$0xf]
      %v224 = vld [vmem:[#allocation9 + $0x24] sm:$0xf]
      %v225 = vld [vmem:[#allocation9 + $0x28] sm:$0xf]
      %v226 = vld [vmem:[#allocation9 + $0x2c] sm:$0xf]
      %v227 = vld [vmem:[#allocation9 + $0x30] sm:$0xf]
      %v228 = vld [vmem:[#allocation9 + $0x34] sm:$0xf]
      %v229 = vld [vmem:[#allocation9 + $0x38] sm:$0xf]
      %v230 = vld [vmem:[#allocation9 + $0x3c] sm:$0xf]
      %v247 = vunpack.c.l.b16 %v199
      %v248 = vunpack.c.l.b16 %v200
      %v249 = vunpack.c.l.b16 %v201
      %v250 = vunpack.c.l.b16 %v202
      %v251 = vunpack.c.l.b16 %v203
      %v252 = vunpack.c.l.b16 %v204
      %v253 = vunpack.c.l.b16 %v205
      %v254 = vunpack.c.l.b16 %v206
      %v255 = vunpack.c.l.b16 %v207
      %v256 = vunpack.c.l.b16 %v208
      %v257 = vunpack.c.l.b16 %v209
      %v258 = vunpack.c.l.b16 %v210
      %v259 = vunpack.c.l.b16 %v211
      %v260 = vunpack.c.l.b16 %v212
      %v261 = vunpack.c.l.b16 %v213
      %v262 = vunpack.c.l.b16 %v214
      %v263 = vpack.c.b16 %v248, %v247
      %v264 = vpack.c.b16 %v250, %v249
      %v265 = vpack.c.b16 %v252, %v251
      %v266 = vpack.c.b16 %v254, %v253
      %v267 = vpack.c.b16 %v256, %v255
      %v268 = vpack.c.b16 %v258, %v257
      %v269 = vpack.c.b16 %v260, %v259
      %v270 = vpack.c.b16 %v262, %v261
      %v295 = vunpack.c.l.b16 %v215
      %v296 = vunpack.c.l.b16 %v216
      %v297 = vunpack.c.l.b16 %v217
      %v298 = vunpack.c.l.b16 %v218
      %v299 = vunpack.c.l.b16 %v219
      %v300 = vunpack.c.l.b16 %v220
      %v301 = vunpack.c.l.b16 %v221
      %v302 = vunpack.c.l.b16 %v222
      %v303 = vunpack.c.l.b16 %v223
      %v304 = vunpack.c.l.b16 %v224
      %v305 = vunpack.c.l.b16 %v225
      %v306 = vunpack.c.l.b16 %v226
      %v307 = vunpack.c.l.b16 %v227
      %v308 = vunpack.c.l.b16 %v228
      %v309 = vunpack.c.l.b16 %v229
      %v310 = vunpack.c.l.b16 %v230
      %v311 = vpack.c.b16 %v296, %v295
      %v312 = vpack.c.b16 %v298, %v297
      %v313 = vpack.c.b16 %v300, %v299
      %v314 = vpack.c.b16 %v302, %v301
      %v315 = vpack.c.b16 %v304, %v303
      %v316 = vpack.c.b16 %v306, %v305
      %v317 = vpack.c.b16 %v308, %v307
      %v318 = vpack.c.b16 %v310, %v309
      %327 = vmatpush.bf16.msra.mxu0 %v318
      %328 = vmatpush.bf16.msra.mxu0 %v317
      %329 = vmatpush.bf16.msra.mxu0 %v316
      %330 = vmatpush.bf16.msra.mxu0 %v315
      %331 = vmatpush.bf16.msra.mxu0 %v314
      %332 = vmatpush.bf16.msra.mxu0 %v313
      %333 = vmatpush.bf16.msra.mxu0 %v312
      %334 = vmatpush.bf16.msra.mxu0 %v311
      %335 = vmatmul.bf16.gmra.mxu0 %v263
      %v336 = vpop.f32.mrf.mxu0
      %v337 = vadd.f32 0.0, %v336
      %v338 = vpop.f32.mrf.mxu0
      %v339 = vadd.f32 0.0, %v338
      %340 = vmatmul.bf16.gmra.mxu0 %v264
      %v341 = vpop.f32.mrf.mxu0
      %v342 = vadd.f32 0.0, %v341
      %v343 = vpop.f32.mrf.mxu0
      %v344 = vadd.f32 0.0, %v343
      %345 = vmatmul.bf16.gmra.mxu0 %v265
      %v346 = vpop.f32.mrf.mxu0
      %v347 = vadd.f32 0.0, %v346
      %v348 = vpop.f32.mrf.mxu0
      %v349 = vadd.f32 0.0, %v348
      %350 = vmatmul.bf16.gmra.mxu0 %v266
      %v351 = vpop.f32.mrf.mxu0
      %v352 = vadd.f32 0.0, %v351
      %v353 = vpop.f32.mrf.mxu0
      %v354 = vadd.f32 0.0, %v353
      %355 = vmatmul.bf16.gmra.mxu0 %v267
      %v356 = vpop.f32.mrf.mxu0
      %v357 = vadd.f32 0.0, %v356
      %v358 = vpop.f32.mrf.mxu0
      %v359 = vadd.f32 0.0, %v358
      %360 = vmatmul.bf16.gmra.mxu0 %v268
      %v361 = vpop.f32.mrf.mxu0
      %v362 = vadd.f32 0.0, %v361
      %v363 = vpop.f32.mrf.mxu0
      %v364 = vadd.f32 0.0, %v363
      %365 = vmatmul.bf16.gmra.mxu0 %v269
      %v366 = vpop.f32.mrf.mxu0
      %v367 = vadd.f32 0.0, %v366
      %v368 = vpop.f32.mrf.mxu0
      %v369 = vadd.f32 0.0, %v368
      %370 = vmatmul.bf16.gmra.mxu0 %v270
      %v371 = vpop.f32.mrf.mxu0
      %v372 = vadd.f32 0.0, %v371
      %v373 = vpop.f32.mrf.mxu0
      %v374 = vadd.f32 0.0, %v373
      %375 = vdwg.mxu0
      %v376 = vadd.f32 %v183, %v337
      %v377 = vadd.f32 %v184, %v339
      %v378 = vadd.f32 %v185, %v342
      %v379 = vadd.f32 %v186, %v344
      %v380 = vadd.f32 %v187, %v347
      %v381 = vadd.f32 %v188, %v349
      %v382 = vadd.f32 %v189, %v352
      %v383 = vadd.f32 %v190, %v354
      %v384 = vadd.f32 %v191, %v357
      %v385 = vadd.f32 %v192, %v359
      %v386 = vadd.f32 %v193, %v362
      %v387 = vadd.f32 %v194, %v364
      %v388 = vadd.f32 %v195, %v367
      %v389 = vadd.f32 %v196, %v369
      %v390 = vadd.f32 %v197, %v372
      %v391 = vadd.f32 %v198, %v374
      %392 = vst [vmem:[#allocation2] sm:$0xff] %v376
      %393 = vst [vmem:[#allocation2 + $0x10] sm:$0xff] %v377
      %394 = vst [vmem:[#allocation2 + $0x20] sm:$0xff] %v378
      %395 = vst [vmem:[#allocation2 + $0x30] sm:$0xff] %v379
      %396 = vst [vmem:[#allocation2 + $0x40] sm:$0xff] %v380
      %397 = vst [vmem:[#allocation2 + $0x50] sm:$0xff] %v381
      %398 = vst [vmem:[#allocation2 + $0x60] sm:$0xff] %v382
      %399 = vst [vmem:[#allocation2 + $0x70] sm:$0xff] %v383
      %400 = vst [vmem:[#allocation2 + $0x80] sm:$0xff] %v384
      %401 = vst [vmem:[#allocation2 + $0x90] sm:$0xff] %v385
      %402 = vst [vmem:[#allocation2 + $0xa0] sm:$0xff] %v386
      %403 = vst [vmem:[#allocation2 + $0xb0] sm:$0xff] %v387
      %404 = vst [vmem:[#allocation2 + $0xc0] sm:$0xff] %v388
      %405 = vst [vmem:[#allocation2 + $0xd0] sm:$0xff] %v389
      %406 = vst [vmem:[#allocation2 + $0xe0] sm:$0xff] %v390
      %407 = vst [vmem:[#allocation2 + $0xf0] sm:$0xff] %v391
    $region45: #{tpu_custom_call.1} parent=1 // pred_fallthru
      _
    // Predicated region
    $region46: #{tpu_custom_call.1} parent=1 // pred_check
      %p408 = pneg %p110
    $region47: #{tpu_custom_call.1} parent=1 // pred_check_branch
      %410 = sbr.rel (%p408) target = $region49
    $region48: #{tpu_custom_call.1} parent=1 // pred_region
      %v411 = vld [vmem:[#allocation2] sm:$0xff]
      %v412 = vld [vmem:[#allocation2 + $0x8] sm:$0xff]
      %v413 = vld [vmem:[#allocation2 + $0x10] sm:$0xff]
      %v414 = vld [vmem:[#allocation2 + $0x18] sm:$0xff]
      %v415 = vld [vmem:[#allocation2 + $0x20] sm:$0xff]
      %v416 = vld [vmem:[#allocation2 + $0x28] sm:$0xff]
      %v417 = vld [vmem:[#allocation2 + $0x30] sm:$0xff]
      %v418 = vld [vmem:[#allocation2 + $0x38] sm:$0xff]
      %v419 = vld [vmem:[#allocation2 + $0x40] sm:$0xff]
      %v420 = vld [vmem:[#allocation2 + $0x48] sm:$0xff]
      %v421 = vld [vmem:[#allocation2 + $0x50] sm:$0xff]
      %v422 = vld [vmem:[#allocation2 + $0x58] sm:$0xff]
      %v423 = vld [vmem:[#allocation2 + $0x60] sm:$0xff]
      %v424 = vld [vmem:[#allocation2 + $0x68] sm:$0xff]
      %v425 = vld [vmem:[#allocation2 + $0x70] sm:$0xff]
      %v426 = vld [vmem:[#allocation2 + $0x78] sm:$0xff]
      %v427 = vld [vmem:[#allocation2 + $0x80] sm:$0xff]
      %v428 = vld [vmem:[#allocation2 + $0x88] sm:$0xff]
      %v429 = vld [vmem:[#allocation2 + $0x90] sm:$0xff]
      %v430 = vld [vmem:[#allocation2 + $0x98] sm:$0xff]
      %v431 = vld [vmem:[#allocation2 + $0xa0] sm:$0xff]
      %v432 = vld [vmem:[#allocation2 + $0xa8] sm:$0xff]
      %v433 = vld [vmem:[#allocation2 + $0xb0] sm:$0xff]
      %v434 = vld [vmem:[#allocation2 + $0xb8] sm:$0xff]
      %v435 = vld [vmem:[#allocation2 + $0xc0] sm:$0xff]
      %v436 = vld [vmem:[#allocation2 + $0xc8] sm:$0xff]
      %v437 = vld [vmem:[#allocation2 + $0xd0] sm:$0xff]
      %v438 = vld [vmem:[#allocation2 + $0xd8] sm:$0xff]
      %v439 = vld [vmem:[#allocation2 + $0xe0] sm:$0xff]
      %v440 = vld [vmem:[#allocation2 + $0xe8] sm:$0xff]
      %v441 = vld [vmem:[#allocation2 + $0xf0] sm:$0xff]
      %v442 = vld [vmem:[#allocation2 + $0xf8] sm:$0xff]
      %v443 = vpack.c.bf16 %v413, %v411
      %v444 = vpack.c.bf16 %v414, %v412
      %v445 = vpack.c.bf16 %v417, %v415
      %v446 = vpack.c.bf16 %v418, %v416
      %v447 = vpack.c.bf16 %v421, %v419
      %v448 = vpack.c.bf16 %v422, %v420
      %v449 = vpack.c.bf16 %v425, %v423
      %v450 = vpack.c.bf16 %v426, %v424
      %v451 = vpack.c.bf16 %v429, %v427
      %v452 = vpack.c.bf16 %v430, %v428
      %v453 = vpack.c.bf16 %v433, %v431
      %v454 = vpack.c.bf16 %v434, %v432
      %v455 = vpack.c.bf16 %v437, %v435
      %v456 = vpack.c.bf16 %v438, %v436
      %v457 = vpack.c.bf16 %v441, %v439
      %v458 = vpack.c.bf16 %v442, %v440
      %v459 = vld [vmem:[#allocation12] sm:$0xf]
      %v460 = vld [vmem:[#allocation12 + $0x4] sm:$0xf]
      %v461 = vld [vmem:[#allocation12 + $0x8] sm:$0xf]
      %v462 = vld [vmem:[#allocation12 + $0xc] sm:$0xf]
      %v463 = vld [vmem:[#allocation12 + $0x10] sm:$0xf]
      %v464 = vld [vmem:[#allocation12 + $0x14] sm:$0xf]
      %v465 = vld [vmem:[#allocation12 + $0x18] sm:$0xf]
      %v466 = vld [vmem:[#allocation12 + $0x1c] sm:$0xf]
      %v467 = vld [vmem:[#allocation12 + $0x20] sm:$0xf]
      %v468 = vld [vmem:[#allocation12 + $0x24] sm:$0xf]
      %v469 = vld [vmem:[#allocation12 + $0x28] sm:$0xf]
      %v470 = vld [vmem:[#allocation12 + $0x2c] sm:$0xf]
      %v471 = vld [vmem:[#allocation12 + $0x30] sm:$0xf]
      %v472 = vld [vmem:[#allocation12 + $0x34] sm:$0xf]
      %v473 = vld [vmem:[#allocation12 + $0x38] sm:$0xf]
      %v474 = vld [vmem:[#allocation12 + $0x3c] sm:$0xf]
      %v475 = vld [vmem:[#allocation12 + $0x40] sm:$0xf]
      %v476 = vld [vmem:[#allocation12 + $0x44] sm:$0xf]
      %v477 = vld [vmem:[#allocation12 + $0x48] sm:$0xf]
      %v478 = vld [vmem:[#allocation12 + $0x4c] sm:$0xf]
      %v479 = vld [vmem:[#allocation12 + $0x50] sm:$0xf]
      %v480 = vld [vmem:[#allocation12 + $0x54] sm:$0xf]
      %v481 = vld [vmem:[#allocation12 + $0x58] sm:$0xf]
      %v482 = vld [vmem:[#allocation12 + $0x5c] sm:$0xf]
      %v483 = vld [vmem:[#allocation12 + $0x60] sm:$0xf]
      %v484 = vld [vmem:[#allocation12 + $0x64] sm:$0xf]
      %v485 = vld [vmem:[#allocation12 + $0x68] sm:$0xf]
      %v486 = vld [vmem:[#allocation12 + $0x6c] sm:$0xf]
      %v487 = vld [vmem:[#allocation12 + $0x70] sm:$0xf]
      %v488 = vld [vmem:[#allocation12 + $0x74] sm:$0xf]
      %v489 = vld [vmem:[#allocation12 + $0x78] sm:$0xf]
      %v490 = vld [vmem:[#allocation12 + $0x7c] sm:$0xf]
      %v491 = vld [vmem:[%s6] sm:$0x1]
      %v492 = vunpack.c.l.bf16 %v491
      %v493 = vperm.slane %v492, 0
      %v526 = vunpack.c.l.b16 %v459
      %v527 = vunpack.c.l.b16 %v460
      %v528 = vunpack.c.l.b16 %v461
      %v529 = vunpack.c.l.b16 %v462
      %v530 = vunpack.c.l.b16 %v463
      %v531 = vunpack.c.l.b16 %v464
      %v532 = vunpack.c.l.b16 %v465
      %v533 = vunpack.c.l.b16 %v466
      %v534 = vunpack.c.l.b16 %v467
      %v535 = vunpack.c.l.b16 %v468
      %v536 = vunpack.c.l.b16 %v469
      %v537 = vunpack.c.l.b16 %v470
      %v538 = vunpack.c.l.b16 %v471
      %v539 = vunpack.c.l.b16 %v472
      %v540 = vunpack.c.l.b16 %v473
      %v541 = vunpack.c.l.b16 %v474
      %v542 = vunpack.c.l.b16 %v475
      %v543 = vunpack.c.l.b16 %v476
      %v544 = vunpack.c.l.b16 %v477
      %v545 = vunpack.c.l.b16 %v478
      %v546 = vunpack.c.l.b16 %v479
      %v547 = vunpack.c.l.b16 %v480
      %v548 = vunpack.c.l.b16 %v481
      %v549 = vunpack.c.l.b16 %v482
      %v550 = vunpack.c.l.b16 %v483
      %v551 = vunpack.c.l.b16 %v484
      %v552 = vunpack.c.l.b16 %v485
      %v553 = vunpack.c.l.b16 %v486
      %v554 = vunpack.c.l.b16 %v487
      %v555 = vunpack.c.l.b16 %v488
      %v556 = vunpack.c.l.b16 %v489
      %v557 = vunpack.c.l.b16 %v490
      %v558 = vpack.c.b16 %v527, %v526
      %v559 = vpack.c.b16 %v529, %v528
      %v560 = vpack.c.b16 %v531, %v530
      %v561 = vpack.c.b16 %v533, %v532
      %v562 = vpack.c.b16 %v535, %v534
      %v563 = vpack.c.b16 %v537, %v536
      %v564 = vpack.c.b16 %v539, %v538
      %v565 = vpack.c.b16 %v541, %v540
      %v566 = vpack.c.b16 %v543, %v542
      %v567 = vpack.c.b16 %v545, %v544
      %v568 = vpack.c.b16 %v547, %v546
      %v569 = vpack.c.b16 %v549, %v548
      %v570 = vpack.c.b16 %v551, %v550
      %v571 = vpack.c.b16 %v553, %v552
      %v572 = vpack.c.b16 %v555, %v554
      %v573 = vpack.c.b16 %v557, %v556
      %590 = vmatpush.bf16.msra.mxu0 %v565
      %591 = vmatpush.bf16.msra.mxu0 %v564
      %592 = vmatpush.bf16.msra.mxu0 %v563
      %593 = vmatpush.bf16.msra.mxu0 %v562
      %594 = vmatpush.bf16.msra.mxu0 %v561
      %595 = vmatpush.bf16.msra.mxu0 %v560
      %596 = vmatpush.bf16.msra.mxu0 %v559
      %597 = vmatpush.bf16.msra.mxu0 %v558
      %598 = vmatmul.bf16.gmra.mxu0 %v443
      %v599 = vpop.f32.mrf.mxu0
      %v600 = vadd.f32 %v493, %v599
      %v601 = vpop.f32.mrf.mxu0
      %v602 = vadd.f32 %v493, %v601
      %603 = vmatmul.bf16.gmra.mxu0 %v445
      %v604 = vpop.f32.mrf.mxu0
      %v605 = vadd.f32 %v493, %v604
      %v606 = vpop.f32.mrf.mxu0
      %v607 = vadd.f32 %v493, %v606
      %608 = vmatmul.bf16.gmra.mxu0 %v447
      %v609 = vpop.f32.mrf.mxu0
      %v610 = vadd.f32 %v493, %v609
      %v611 = vpop.f32.mrf.mxu0
      %v612 = vadd.f32 %v493, %v611
      %613 = vmatmul.bf16.gmra.mxu0 %v449
      %v614 = vpop.f32.mrf.mxu0
      %v615 = vadd.f32 %v493, %v614
      %v616 = vpop.f32.mrf.mxu0
      %v617 = vadd.f32 %v493, %v616
      %618 = vmatmul.bf16.gmra.mxu0 %v451
      %v619 = vpop.f32.mrf.mxu0
      %v620 = vadd.f32 %v493, %v619
      %v621 = vpop.f32.mrf.mxu0
      %v622 = vadd.f32 %v493, %v621
      %623 = vmatmul.bf16.gmra.mxu0 %v453
      %v624 = vpop.f32.mrf.mxu0
      %v625 = vadd.f32 %v493, %v624
      %v626 = vpop.f32.mrf.mxu0
      %v627 = vadd.f32 %v493, %v626
      %628 = vmatmul.bf16.gmra.mxu0 %v455
      %v629 = vpop.f32.mrf.mxu0
      %v630 = vadd.f32 %v493, %v629
      %v631 = vpop.f32.mrf.mxu0
      %v632 = vadd.f32 %v493, %v631
      %633 = vmatmul.bf16.gmra.mxu0 %v457
      %v634 = vpop.f32.mrf.mxu0
      %v635 = vadd.f32 %v493, %v634
      %v636 = vpop.f32.mrf.mxu0
      %v637 = vadd.f32 %v493, %v636
      %638 = vdwg.mxu0
      %639 = vmatpush.bf16.msra.mxu0 %v573
      %640 = vmatpush.bf16.msra.mxu0 %v572
      %641 = vmatpush.bf16.msra.mxu0 %v571
      %642 = vmatpush.bf16.msra.mxu0 %v570
      %643 = vmatpush.bf16.msra.mxu0 %v569
      %644 = vmatpush.bf16.msra.mxu0 %v568
      %645 = vmatpush.bf16.msra.mxu0 %v567
      %646 = vmatpush.bf16.msra.mxu0 %v566
      %647 = vmatmul.bf16.gmra.mxu0 %v444
      %v648 = vpop.f32.mrf.mxu0
      %v649 = vadd.f32 %v600, %v648
      %v650 = vpop.f32.mrf.mxu0
      %v651 = vadd.f32 %v602, %v650
      %652 = vmatmul.bf16.gmra.mxu0 %v446
      %v653 = vpop.f32.mrf.mxu0
      %v654 = vadd.f32 %v605, %v653
      %v655 = vpop.f32.mrf.mxu0
      %v656 = vadd.f32 %v607, %v655
      %657 = vmatmul.bf16.gmra.mxu0 %v448
      %v658 = vpop.f32.mrf.mxu0
      %v659 = vadd.f32 %v610, %v658
      %v660 = vpop.f32.mrf.mxu0
      %v661 = vadd.f32 %v612, %v660
      %662 = vmatmul.bf16.gmra.mxu0 %v450
      %v663 = vpop.f32.mrf.mxu0
      %v664 = vadd.f32 %v615, %v663
      %v665 = vpop.f32.mrf.mxu0
      %v666 = vadd.f32 %v617, %v665
      %667 = vmatmul.bf16.gmra.mxu0 %v452
      %v668 = vpop.f32.mrf.mxu0
      %v669 = vadd.f32 %v620, %v668
      %v670 = vpop.f32.mrf.mxu0
      %v671 = vadd.f32 %v622, %v670
      %672 = vmatmul.bf16.gmra.mxu0 %v454
      %v673 = vpop.f32.mrf.mxu0
      %v674 = vadd.f32 %v625, %v673
      %v675 = vpop.f32.mrf.mxu0
      %v676 = vadd.f32 %v627, %v675
      %677 = vmatmul.bf16.gmra.mxu0 %v456
      %v678 = vpop.f32.mrf.mxu0
      %v679 = vadd.f32 %v630, %v678
      %v680 = vpop.f32.mrf.mxu0
      %v681 = vadd.f32 %v632, %v680
      %682 = vmatmul.bf16.gmra.mxu0 %v458
      %v683 = vpop.f32.mrf.mxu0
      %v684 = vadd.f32 %v635, %v683
      %v685 = vpop.f32.mrf.mxu0
      %v686 = vadd.f32 %v637, %v685
      %687 = vdwg.mxu0
      %v688 = vmax.f32 %v649, 0.0
      %v689 = vmax.f32 %v651, 0.0
      %v690 = vmax.f32 %v654, 0.0
      %v691 = vmax.f32 %v656, 0.0
      %v692 = vmax.f32 %v659, 0.0
      %v693 = vmax.f32 %v661, 0.0
      %v694 = vmax.f32 %v664, 0.0
      %v695 = vmax.f32 %v666, 0.0
      %v696 = vmax.f32 %v669, 0.0
      %v697 = vmax.f32 %v671, 0.0
      %v698 = vmax.f32 %v674, 0.0
      %v699 = vmax.f32 %v676, 0.0
      %v700 = vmax.f32 %v679, 0.0
      %v701 = vmax.f32 %v681, 0.0
      %v702 = vmax.f32 %v684, 0.0
      %v703 = vmax.f32 %v686, 0.0
      %704 = vst [vmem:[#allocation14] sm:$0xff] %v688
      %705 = vst [vmem:[#allocation14 + $0x8] sm:$0xff] %v689
      %706 = vst [vmem:[#allocation14 + $0x10] sm:$0xff] %v690
      %707 = vst [vmem:[#allocation14 + $0x18] sm:$0xff] %v691
      %708 = vst [vmem:[#allocation14 + $0x20] sm:$0xff] %v692
      %709 = vst [vmem:[#allocation14 + $0x28] sm:$0xff] %v693
      %710 = vst [vmem:[#allocation14 + $0x30] sm:$0xff] %v694
      %711 = vst [vmem:[#allocation14 + $0x38] sm:$0xff] %v695
      %712 = vst [vmem:[#allocation14 + $0x40] sm:$0xff] %v696
      %713 = vst [vmem:[#allocation14 + $0x48] sm:$0xff] %v697
      %714 = vst [vmem:[#allocation14 + $0x50] sm:$0xff] %v698
      %715 = vst [vmem:[#allocation14 + $0x58] sm:$0xff] %v699
      %716 = vst [vmem:[#allocation14 + $0x60] sm:$0xff] %v700
      %717 = vst [vmem:[#allocation14 + $0x68] sm:$0xff] %v701
      %718 = vst [vmem:[#allocation14 + $0x70] sm:$0xff] %v702
      %719 = vst [vmem:[#allocation14 + $0x78] sm:$0xff] %v703
    $region49: #{tpu_custom_call.1} parent=1 // pred_fallthru
      _
    // Predicated region
    $region50: #{tpu_custom_call.1} parent=1 // pred_check
      _
    $region51: #{tpu_custom_call.1} parent=1 // pred_check_branch
      %721 = sbr.rel (0) target = $region53
    $region52: #{tpu_custom_call.1} parent=1 // pred_region
      %723 = vsyncadd [#allocation8], 0
      %s724 = sshll.u32 [#allocation14], 4
      %s725 = int_to_ptr.vmem [resolvable:$true] %s724
      %s726 = sshll.u32 %s7, 4
      %s727 = int_to_ptr.hbm [resolvable:$true] %s726
      %732 = dma.vmem_to_hbm [thread:$0]  %s725, 2048, %s727, [#allocation8], 128, 128, 8
    $region53: #{tpu_custom_call.1} parent=1 // pred_fallthru
      _
    // Predicated region
    $region54: #{tpu_custom_call.1} parent=1 // pred_check
      _
    $region55: #{tpu_custom_call.1} parent=1 // pred_check_branch
      %734 = sbr.rel (0) target = $region57
    $region56: #{tpu_custom_call.1} parent=1 // pred_region
      %736 = dma.done [#allocation8], 2048
    $region57: #{tpu_custom_call.1} parent=1 // pred_fallthru
      _
    %737 = vsyncpa [#allocation7], 1
    %738 = vsyncpa [#allocation10], 1
    %739 = vsyncpa [#allocation13], 1
    %740 = vsyncpa [#allocation8], 1

</llo_original>
